<compile_context>
chip_gen: v5e
topology: v5e:2x2
jax: 0.10.0
libtpu: 0.0.40
codegen_flags: <defaults>
</compile_context>

<pallas_src>
import jax
import jax.numpy as jnp
from jax.experimental import pallas as pl
from jax.experimental.pallas import tpu as pltpu


def _bitparm_kernel_nonfinal(x_ref, sph_ref, b_ref, ta_ref, o_ref):
    # x: (TR, TL); params: (TR, 1) or (1, TL), broadcast by jnp.
    x = x_ref[...].astype(jnp.float32)
    y = x * sph_ref[...] + b_ref[...]
    o_ref[...] = (y + jnp.tanh(y) * ta_ref[...]).astype(o_ref.dtype)


def _bitparm_kernel_final(x_ref, sph_ref, b_ref, o_ref):
    x = x_ref[...].astype(jnp.float32)
    y = x * sph_ref[...] + b_ref[...]
    o_ref[...] = jax.nn.sigmoid(y).astype(o_ref.dtype)


def _choose_tiles(R, L, *, target_block_bytes=2 << 20, elem_bytes=4,
                  max_lanes=2048):
    """Pick (tr, tl): full extent (always legal) or (mult-of-8, mult-of-128)."""
    # Lane tile: full extent if it fits, else the largest allowed mult of 128.
    tl = L if L <= max_lanes else max_lanes  # max_lanes is a multiple of 128
    # Row tile: fill the per-block byte budget (~2 MiB), multiple of 8.
    rows_budget = max(8, target_block_bytes // (tl * elem_bytes))
    tr = R if R <= rows_budget else max(8, (rows_budget // 8) * 8)
    return tr, tl


def bitparm_forward(x, h, b, a=None, final=False):
    """x: (N, C, H, W); h, b, a: (1, C, 1, 1). Returns same shape/dtype as x."""
    N, C, H, W = x.shape
    HW = H * W

    # Per-channel transcendentals done once on C elements (negligible).
    sph_c = jnp.logaddexp(jnp.float32(0.0), h.reshape(C).astype(jnp.float32))
    b_c = b.reshape(C).astype(jnp.float32)
    ta_c = None
    if not final:
        assert a is not None
        ta_c = jnp.tanh(a.reshape(C).astype(jnp.float32))

    # Free row-major 2-D view of NCHW; keep the lane (last) axis dense.
    lane_param = (HW < 128) and (C * HW >= 128)
    if lane_param:
        # (N, C*H*W): params vary along lanes with period H*W.
        R, L = N, C * HW
        x2 = x.reshape(R, L)
        sph = jnp.repeat(sph_c, HW).reshape(1, L)
        bb = jnp.repeat(b_c, HW).reshape(1, L)
        ta = None if final else jnp.repeat(ta_c, HW).reshape(1, L)
    else:
        # (N*C, H*W): row r shares channel r % C -> per-row params.
        R, L = N * C, HW
        x2 = x.reshape(R, L)
        sph = jnp.tile(sph_c, N).reshape(R, 1)
        bb = jnp.tile(b_c, N).reshape(R, 1)
        ta = None if final else jnp.tile(ta_c, N).reshape(R, 1)

    tr, tl = _choose_tiles(R, L)
    grid = (pl.cdiv(R, tr), pl.cdiv(L, tl))

    x_spec = pl.BlockSpec((tr, tl), lambda i, j: (i, j))
    if lane_param:
        p_spec = pl.BlockSpec((1, tl), lambda i, j: (0, j))
    else:
        p_spec = pl.BlockSpec((tr, 1), lambda i, j: (i, 0))
    out_spec = pl.BlockSpec((tr, tl), lambda i, j: (i, j))
    out_shape = jax.ShapeDtypeStruct((R, L), x.dtype)
    cparams = pltpu.CompilerParams(
        dimension_semantics=("parallel", "parallel"))

    if final:
        out2 = pl.pallas_call(
            _bitparm_kernel_final,
            out_shape=out_shape,
            grid=grid,
            in_specs=[x_spec, p_spec, p_spec],
            out_specs=out_spec,
            compiler_params=cparams,
        )(x2, sph, bb)
    else:
        out2 = pl.pallas_call(
            _bitparm_kernel_nonfinal,
            out_shape=out_shape,
            grid=grid,
            in_specs=[x_spec, p_spec, p_spec, p_spec],
            out_specs=out_spec,
            compiler_params=cparams,
        )(x2, sph, bb, ta)

    # Free view back to NCHW.
    return out2.reshape(N, C, H, W)


def _reference(x, h, b, a, final):
    sp_h = jnp.logaddexp(0.0, h)
    y = x * sp_h + b
    if final:
        return jax.nn.sigmoid(y)
    return y + jnp.tanh(y) * jnp.tanh(a)


if __name__ == "__main__":
    key = jax.random.PRNGKey(0)
    kx, kh, kb, ka, kx2 = jax.random.split(key, 5)

    N, C, H, W = 2, 4, 16, 16
    x = jax.random.normal(kx, (N, C, H, W), dtype=jnp.float32)
    # Matches nn.init.normal_(mean=0, std=0.01), shape (1, C, 1, 1).
    h = 0.01 * jax.random.normal(kh, (1, C, 1, 1), dtype=jnp.float32)
    b = 0.01 * jax.random.normal(kb, (1, C, 1, 1), dtype=jnp.float32)
    a = 0.01 * jax.random.normal(ka, (1, C, 1, 1), dtype=jnp.float32)

    # Non-final Bitparm (row-param layout: H*W = 256 >= 128).
    out = bitparm_forward(x, h, b, a, final=False)
    out = jax.block_until_ready(out)
    ref = _reference(x, h, b, a, final=False)
    assert out.shape == x.shape and out.dtype == x.dtype
    assert jnp.allclose(out, ref, atol=1e-5, rtol=1e-5)

    # Final Bitparm (sigmoid head).
    out_f = bitparm_forward(x, h, b, final=True)
    out_f = jax.block_until_ready(out_f)
    ref_f = _reference(x, h, b, None, final=True)
    assert jnp.allclose(out_f, ref_f, atol=1e-5, rtol=1e-5)

    # Small-spatial case exercising the lane-param layout (H*W = 64 < 128).
    xs = jax.random.normal(kx2, (N, C, 8, 8), dtype=jnp.float32)
    out_s = bitparm_forward(xs, h, b, a, final=False)
    out_s = jax.block_until_ready(out_s)
    ref_s = _reference(xs, h, b, a, final=False)
    assert jnp.allclose(out_s, ref_s, atol=1e-5, rtol=1e-5)

    print("KERNEL_OK")
</pallas_src>

<mosaic_0001>
module attributes {stable_mosaic.version = 11 : i64} {
  func.func @_bitparm_kernel_nonfinal(%arg0: i32, %arg1: i32, %arg2: memref<8x256xf32, #tpu.memory_space<vmem>>, %arg3: memref<8x1xf32, #tpu.memory_space<vmem>>, %arg4: memref<8x1xf32, #tpu.memory_space<vmem>>, %arg5: memref<8x1xf32, #tpu.memory_space<vmem>>, %arg6: memref<8x256xf32, #tpu.memory_space<vmem>>) attributes {dimension_semantics = [#tpu.dimension_semantics<parallel>, #tpu.dimension_semantics<parallel>], iteration_bounds = array<i64: 1, 1>, scalar_prefetch = 0 : i64, scratch_operands = 0 : i64, tpu.core_type = #tpu.core_type<tc>, window_params = [{transform_indices = @transform_0, window_bounds = array<i64: 8, 256>}, {transform_indices = @transform_1, window_bounds = array<i64: 8, 1>}, {transform_indices = @transform_2, window_bounds = array<i64: 8, 1>}, {transform_indices = @transform_3, window_bounds = array<i64: 8, 1>}, {transform_indices = @transform_4, window_bounds = array<i64: 8, 256>}]} {
    %c0 = arith.constant 0 : index
    %c0_0 = arith.constant 0 : index
    %0 = vector.load %arg2[%c0, %c0_0] : memref<8x256xf32, #tpu.memory_space<vmem>>, vector<8x256xf32>
    %c0_1 = arith.constant 0 : index
    %c0_2 = arith.constant 0 : index
    %1 = vector.load %arg3[%c0_1, %c0_2] : memref<8x1xf32, #tpu.memory_space<vmem>>, vector<8x1xf32>
    %2 = vector.broadcast %1 : vector<8x1xf32> to vector<8x256xf32>
    %3 = arith.mulf %0, %2 : vector<8x256xf32>
    %c0_3 = arith.constant 0 : index
    %c0_4 = arith.constant 0 : index
    %4 = vector.load %arg4[%c0_3, %c0_4] : memref<8x1xf32, #tpu.memory_space<vmem>>, vector<8x1xf32>
    %5 = vector.broadcast %4 : vector<8x1xf32> to vector<8x256xf32>
    %6 = arith.addf %3, %5 : vector<8x256xf32>
    %7 = math.tanh %6 : vector<8x256xf32>
    %c0_5 = arith.constant 0 : index
    %c0_6 = arith.constant 0 : index
    %8 = vector.load %arg5[%c0_5, %c0_6] : memref<8x1xf32, #tpu.memory_space<vmem>>, vector<8x1xf32>
    %9 = vector.broadcast %8 : vector<8x1xf32> to vector<8x256xf32>
    %10 = arith.mulf %7, %9 : vector<8x256xf32>
    %11 = arith.addf %6, %10 : vector<8x256xf32>
    %c0_7 = arith.constant 0 : index
    %c0_8 = arith.constant 0 : index
    %12 = vector.load %arg6[%c0_7, %c0_8] : memref<8x256xf32, #tpu.memory_space<vmem>>, vector<8x256xf32>
    tpu.vector_store %arg6[%c0_7, %c0_8], %11 {strides = array<i32>} : memref<8x256xf32, #tpu.memory_space<vmem>>, vector<8x256xf32>,
    return
  }
  func.func @transform_0(%arg0: i32, %arg1: i32) -> (i32, i32) {
    %c0_i32 = arith.constant 0 : i32
    return %arg0, %arg1 : i32, i32
  }
  func.func @transform_1(%arg0: i32, %arg1: i32) -> (i32, i32) {
    %c0_i32 = arith.constant 0 : i32
    %c0_i32_0 = arith.constant 0 : i32
    return %arg0, %c0_i32 : i32, i32
  }
  func.func @transform_2(%arg0: i32, %arg1: i32) -> (i32, i32) {
    %c0_i32 = arith.constant 0 : i32
    %c0_i32_0 = arith.constant 0 : i32
    return %arg0, %c0_i32 : i32, i32
  }
  func.func @transform_3(%arg0: i32, %arg1: i32) -> (i32, i32) {
    %c0_i32 = arith.constant 0 : i32
    %c0_i32_0 = arith.constant 0 : i32
    return %arg0, %c0_i32 : i32, i32
  }
  func.func @transform_4(%arg0: i32, %arg1: i32) -> (i32, i32) {
    %c0_i32 = arith.constant 0 : i32
    return %arg0, %arg1 : i32, i32
  }
}

</mosaic_0001>

<llo_original>
// kernel: tpu_custom_call.1
$region0: #{tpu_custom_call.1}
  #allocation0 [shape = 'u32[]', space=smem, size = 0x4, offset = 0x4, fixed_abs, tag = 'smem constant byte address 0x4 - core index']
  #allocation1 [shape = 'u32[72,128]{1,0:T(1,128)}', space=vmem, size = 0x9000, scoped, tag = 'internal scratch']
  %s0 = inlined_call_operand.vmem [shape: f32[8,256], index: 0, kind: input, shape index: {}]
  %s1 = inlined_call_operand.vmem [shape: f32[8,1], index: 1, kind: input, shape index: {}]
  %s2 = inlined_call_operand.vmem [shape: f32[8,1], index: 2, kind: input, shape index: {}]
  %s3 = inlined_call_operand.vmem [shape: f32[8,1], index: 3, kind: input, shape index: {}]
  %s4 = inlined_call_operand.hbm [shape: f32[8,256], index: 4, kind: output, shape index: {}]
  %s5 = sld [smem:[#allocation0]]
  $region26: #{tpu_custom_call.1} parent=0
    _
  %s7 = ssub.s32 1, %s5
  %s8 = scalar_select 0, %s7, %s5
  $region1: #{tpu_custom_call.1} parent=0
    #allocation2 [shape = 'u8[8192]{0}', space=vmem, size = 0x2000, scoped, tag = 'output window, operand 0, single buffered']
    #allocation3 [shape = 's32[1]{0}', space=sflag, size = 0x4, scoped, tag = 'scoped memory for tpu_custom_call.1']
    %9 = vsyncpa [#allocation3], 0
    // Predicated region
    $region2: #{tpu_custom_call.1} parent=1 // pred_check
      _
    $region3: #{tpu_custom_call.1} parent=1 // pred_check_branch
      %11 = sbr.rel (0) target = $region5
    $region4: #{tpu_custom_call.1} parent=1 // pred_region
      _
    $region5: #{tpu_custom_call.1} parent=1 // pred_fallthru
      _
    // Predicated region
    $region6: #{tpu_custom_call.1} parent=1 // pred_check
      _
    $region7: #{tpu_custom_call.1} parent=1 // pred_check_branch
      %13 = sbr.rel (0) target = $region9
    $region8: #{tpu_custom_call.1} parent=1 // pred_region
      _
    $region9: #{tpu_custom_call.1} parent=1 // pred_fallthru
      _
    // Predicated region
    $region10: #{tpu_custom_call.1} parent=1 // pred_check
      _
    $region11: #{tpu_custom_call.1} parent=1 // pred_check_branch
      %15 = sbr.rel (0) target = $region13
    $region12: #{tpu_custom_call.1} parent=1 // pred_region
      _
    $region13: #{tpu_custom_call.1} parent=1 // pred_fallthru
      _
    // Predicated region
    $region14: #{tpu_custom_call.1} parent=1 // pred_check
      _
    $region15: #{tpu_custom_call.1} parent=1 // pred_check_branch
      %17 = sbr.rel (0) target = $region17
    $region16: #{tpu_custom_call.1} parent=1 // pred_region
      _
    $region17: #{tpu_custom_call.1} parent=1 // pred_fallthru
      _
    %v18 = vld [vmem:[%s0] sm:$0xff]
    %v19 = vld [vmem:[%s0 + $0x8] sm:$0xff]
    %v20 = vld [vmem:[%s1] sm:$0xff]
    %22 = vset.pattern.permute.xlu0 0
    %23 = vperm.xlu0 %22, %v20
    %v24 = vpop.permute.xlu0 %23
    %v26 = vmul.f32 %v18, %v24
    %v27 = vmul.f32 %v19, %v24
    %v28 = vld [vmem:[%s2] sm:$0xff]
    %30 = vset.pattern.permute.xlu0 0
    %31 = vperm.xlu0 %30, %v28
    %v32 = vpop.permute.xlu0 %31
    %v34 = vadd.f32 %v26, %v32
    %v35 = vadd.f32 %v27, %v32
    %v36 = vtanh.pop %v34
    %v37 = vtanh.pop %v35
    %v38 = vld [vmem:[%s3] sm:$0xff]
    %40 = vset.pattern.permute.xlu0 0
    %41 = vperm.xlu0 %40, %v38
    %v42 = vpop.permute.xlu0 %41
    %v44 = vmul.f32 %v36, %v42
    %v45 = vmul.f32 %v37, %v42
    %v46 = vadd.f32 %v34, %v44
    %v47 = vadd.f32 %v35, %v45
    %48 = vst [vmem:[#allocation2] sm:$0xff] %v46
    %49 = vst [vmem:[#allocation2 + $0x8] sm:$0xff] %v47
    // Predicated region
    $region18: #{tpu_custom_call.1} parent=1 // pred_check
      _
    $region19: #{tpu_custom_call.1} parent=1 // pred_check_branch
      %51 = sbr.rel (0) target = $region21
    $region20: #{tpu_custom_call.1} parent=1 // pred_region
      %53 = vsyncadd [#allocation3], 0
      %s55 = sshll.u32 [#allocation2], 4
      %s56 = int_to_ptr.vmem [resolvable:$true] %s55
      %s57 = sshll.u32 %s4, 4
      %s58 = int_to_ptr.hbm [resolvable:$true] %s57
      %60 = dma.vmem_to_hbm [thread:$0]  %s56, 256, %s58, [#allocation3]
    $region21: #{tpu_custom_call.1} parent=1 // pred_fallthru
      _
    // Predicated region
    $region22: #{tpu_custom_call.1} parent=1 // pred_check
      _
    $region23: #{tpu_custom_call.1} parent=1 // pred_check_branch
      %62 = sbr.rel (0) target = $region25
    $region24: #{tpu_custom_call.1} parent=1 // pred_region
      %64 = dma.done [#allocation3], 256
    $region25: #{tpu_custom_call.1} parent=1 // pred_fallthru
      _
    %65 = vsyncpa [#allocation3], 1

</llo_original>
